<compile_context>
chip_gen: v7x
topology: tpu7x:2x2x1
jax: 0.10.0
libtpu: 0.0.40
codegen_flags: <defaults>
</compile_context>

<pallas_src>
import jax
import jax.numpy as jnp
from jax.experimental import pallas as pl
from jax.experimental.pallas import tpu as pltpu

_LANE = 128


def _mish_kernel(x_ref, o_ref):
    xf = x_ref[...].astype(jnp.float32)
    # tanh(softplus(x)) == (t^2 + 2t) / (t^2 + 2t + 2) with t = exp(x).
    # Clamp exp's argument at 20 (PyTorch softplus threshold): for x > 20,
    # softplus(x) = x and tanh(x) == 1 in f32, so y == x on that branch.
    t = jnp.exp(jnp.minimum(xf, 20.0))
    num = t * (t + 2.0)
    den = num + 2.0
    # EUP reciprocal + one Newton-Raphson step (rel err ~1e-7) instead of a
    # VALU-heavy true f32 divide.
    inv = pl.reciprocal(den, approx=True)
    inv = inv * (2.0 - den * inv)
    y = jnp.where(xf > 20.0, xf, xf * (num * inv))
    o_ref[...] = y.astype(o_ref.dtype)


def mish(x, *, target_block_bytes=8 * 1024 * 1024, donate=False):
    """Elementwise Mish; layout-agnostic (works for any shape/dtype)."""
    orig_shape = x.shape
    orig_dtype = x.dtype
    n = x.size
    if n == 0:
        return x

    itemsize = jnp.dtype(orig_dtype).itemsize

    # Flatten. Pad only up to the next multiple of the lane width (< 128 extra
    # elements) and only when actually needed, so the common case is a free
    # reshape with no extra HBM round trip.
    n_pad = pl.cdiv(n, _LANE) * _LANE
    x_flat = jnp.ravel(x)
    padded = n_pad != n
    if padded:
        # TODO(synk): fully eliminate the tail copy with a masked 1-D store path;
        # allow_input_fusion below at least lets the pad fuse into the operand.
        x_flat = jnp.pad(x_flat, (0, n_pad - n))

    # Widest lane-dense last dim that divides the flat length (>=128, <=2048).
    W = _LANE
    for cand in (2048, 1024, 512, 256):
        if n_pad % cand == 0:
            W = cand
            break
    rows = n_pad // W
    x2d = x_flat.reshape(rows, W)

    # Sub-f32 inputs are upcast to f32 inside the kernel; halve the block so any
    # materialized f32 temporaries still fit easily in VMEM (v7x: 64 MiB).
    blk_bytes = target_block_bytes if itemsize >= 4 else target_block_bytes // 2

    # Sublane packing per dtype: f32 -> 8, bf16 -> 16, int8/fp8 -> 32.
    sub = max(8, 32 // itemsize)

    tile_rows = max(blk_bytes // (W * itemsize), 1)
    tile_rows = max((tile_rows // sub) * sub, sub)
    # Keep >= ~4 grid steps whenever the slab is splittable so the "parallel"
    # axis shards across v7x's two TensorCores and the DMA pipeline overlaps.
    if rows > sub:
        cap = max(pl.cdiv(pl.cdiv(rows, 4), sub) * sub, sub)
        tile_rows = min(tile_rows, cap)
    if rows <= tile_rows:
        tile_rows = rows  # full extent is always a legal block dim (tiny input)
    grid = (pl.cdiv(rows, tile_rows),)  # ragged last block handled by Pallas

    cost = pl.CostEstimate(
        flops=8 * n,
        transcendentals=n,          # one exp per element after the rewrite
        bytes_accessed=2 * n * itemsize,
    )

    out2d = pl.pallas_call(
        _mish_kernel,
        out_shape=jax.ShapeDtypeStruct((rows, W), orig_dtype),
        grid_spec=pltpu.PrefetchScalarGridSpec(
            num_scalar_prefetch=0,
            grid=grid,
            in_specs=[pl.BlockSpec((tile_rows, W), lambda i: (i, 0))],
            out_specs=pl.BlockSpec((tile_rows, W), lambda i: (i, 0)),
        ),
        compiler_params=pltpu.CompilerParams(
            dimension_semantics=("parallel",),       # shard grid across TCs
            vmem_limit_bytes=40 * 1024 * 1024,       # 2 ops x 2 bufs x 8 MiB + headroom
            allow_input_fusion=[True] if padded else None,
        ),
        cost_estimate=cost,
        input_output_aliases=({0: 0} if donate else {}),
    )(x2d)

    out_flat = out2d.reshape(-1)
    if padded:
        out_flat = out_flat[:n]
    return out_flat.reshape(orig_shape)


def mish_ref(x):
    xf = x.astype(jnp.float32)
    return (xf * jnp.tanh(jax.nn.softplus(xf))).astype(x.dtype)


if __name__ == "__main__":
    key = jax.random.PRNGKey(0)
    x = jax.random.normal(key, (2, 4, 16, 16), dtype=jnp.float32) * 3.0

    y = mish(x)
    jax.block_until_ready(y)

    y_ref = mish_ref(x)
    assert y.shape == x.shape and y.dtype == x.dtype
    assert jnp.allclose(y, y_ref, atol=1e-5, rtol=1e-5)
    print("KERNEL_OK")
</pallas_src>

<mosaic_0001>
module attributes {stable_mosaic.version = 11 : i64} {
  func.func @_mish_kernel(%arg0: i32, %arg1: memref<1x2048xf32, #tpu.memory_space<vmem>>, %arg2: memref<1x2048xf32, #tpu.memory_space<vmem>>) attributes {dimension_semantics = [#tpu.dimension_semantics<parallel>], iteration_bounds = array<i64: 1>, scalar_prefetch = 0 : i64, scratch_operands = 0 : i64, tpu.core_type = #tpu.core_type<tc>, window_params = [{transform_indices = @transform_0, window_bounds = array<i64: 1, 2048>}, {transform_indices = @transform_1, window_bounds = array<i64: 1, 2048>}]} {
    %c0 = arith.constant 0 : index
    %c0_0 = arith.constant 0 : index
    %0 = vector.load %arg1[%c0, %c0_0] : memref<1x2048xf32, #tpu.memory_space<vmem>>, vector<1x2048xf32>
    %cst = arith.constant 2.000000e+01 : f32
    %1 = vector.broadcast %cst : f32 to vector<1x2048xf32>
    %2 = arith.minimumf %0, %1 : vector<1x2048xf32>
    %3 = math.exp %2 : vector<1x2048xf32>
    %cst_1 = arith.constant 2.000000e+00 : f32
    %4 = vector.broadcast %cst_1 : f32 to vector<1x2048xf32>
    %5 = arith.addf %3, %4 : vector<1x2048xf32>
    %6 = arith.mulf %3, %5 : vector<1x2048xf32>
    %cst_2 = arith.constant 2.000000e+00 : f32
    %7 = vector.broadcast %cst_2 : f32 to vector<1x2048xf32>
    %8 = arith.addf %6, %7 : vector<1x2048xf32>
    %9 = tpu.reciprocal %8 {approx = true} : vector<1x2048xf32> -> vector<1x2048xf32>
    %10 = arith.mulf %8, %9 : vector<1x2048xf32>
    %cst_3 = arith.constant 2.000000e+00 : f32
    %11 = vector.broadcast %cst_3 : f32 to vector<1x2048xf32>
    %12 = arith.subf %11, %10 : vector<1x2048xf32>
    %13 = arith.mulf %9, %12 : vector<1x2048xf32>
    %cst_4 = arith.constant 2.000000e+01 : f32
    %14 = vector.broadcast %cst_4 : f32 to vector<1x2048xf32>
    %15 = arith.cmpf ogt, %0, %14 : vector<1x2048xf32>
    %16 = arith.mulf %6, %13 : vector<1x2048xf32>
    %17 = arith.mulf %0, %16 : vector<1x2048xf32>
    %18 = arith.select %15, %0, %17 : vector<1x2048xi1>, vector<1x2048xf32>
    %c0_5 = arith.constant 0 : index
    %c0_6 = arith.constant 0 : index
    %19 = vector.load %arg2[%c0_5, %c0_6] : memref<1x2048xf32, #tpu.memory_space<vmem>>, vector<1x2048xf32>
    tpu.vector_store %arg2[%c0_5, %c0_6], %18 {strides = array<i32>} : memref<1x2048xf32, #tpu.memory_space<vmem>>, vector<1x2048xf32>,
    return
  }
  func.func @transform_0(%arg0: i32) -> (i32, i32) {
    %c0_i32 = arith.constant 0 : i32
    %c0_i32_0 = arith.constant 0 : i32
    return %arg0, %c0_i32 : i32, i32
  }
  func.func @transform_1(%arg0: i32) -> (i32, i32) {
    %c0_i32 = arith.constant 0 : i32
    %c0_i32_0 = arith.constant 0 : i32
    return %arg0, %c0_i32 : i32, i32
  }
}

</mosaic_0001>

<llo_original>
// kernel: tpu_custom_call.1
$region0: #{tpu_custom_call.1}
  #allocation0 [shape = 'u32[]', space=smem, size = 0x4, offset = 0x4, fixed_abs, tag = 'smem constant byte address 0x4 - core index']
  #allocation1 [shape = 'u32[144,128]{1,0:T(1,128)}', space=vmem, size = 0x12000, scoped, tag = 'internal scratch']
  %s0 = inlined_call_operand.hbm [shape: f32[1,2048], index: 0, kind: input, shape index: {}]
  %s1 = inlined_call_operand.hbm [shape: f32[1,2048], index: 1, kind: output, shape index: {}]
  %s2 = sld [smem:[#allocation0]]
  $region18: #{tpu_custom_call.1} parent=0
    _
  %s4 = ssub.s32 1, %s2
  %s5 = scalar_select 0, %s4, %s2
  $region1: #{tpu_custom_call.1} parent=0
    #allocation2 [shape = 'u8[8192]{0}', space=vmem, size = 0x2000, scoped, tag = 'input window, operand 0, single buffered']
    #allocation3 [shape = 's32[1]{0}', space=sflag, size = 0x4, scoped, tag = 'scoped memory for tpu_custom_call.1']
    #allocation4 [shape = 's32[1]{0}', space=sflag, size = 0x4, scoped, tag = 'scoped memory for tpu_custom_call.1']
    #allocation5 [shape = 'u8[8192]{0}', space=vmem, size = 0x2000, scoped, tag = 'output window, operand 0, single buffered']
    %6 = vsyncpa [#allocation3], 0
    %7 = vsyncpa [#allocation4], 0
    // Predicated region
    $region2: #{tpu_custom_call.1} parent=1 // pred_check
      _
    $region3: #{tpu_custom_call.1} parent=1 // pred_check_branch
      %9 = sbr.rel (0) target = $region5
    $region4: #{tpu_custom_call.1} parent=1 // pred_region
      %s11 = ssub.s32 256, 256
      %12 = vsyncadd [#allocation3], %s11
      %s14 = sshll.u32 [#allocation2], 4
      %s15 = int_to_ptr.vmem [resolvable:$true] %s14
      %17 = dma.hbm_to_vmem [thread:$0]  %s0, 256, %s15, [#allocation3]
    $region5: #{tpu_custom_call.1} parent=1 // pred_fallthru
      _
    // Predicated region
    $region6: #{tpu_custom_call.1} parent=1 // pred_check
      _
    $region7: #{tpu_custom_call.1} parent=1 // pred_check_branch
      %19 = sbr.rel (0) target = $region9
    $region8: #{tpu_custom_call.1} parent=1 // pred_region
      %20 = dma.done [#allocation3], 256
    $region9: #{tpu_custom_call.1} parent=1 // pred_fallthru
      _
    %v21 = vld [vmem:[#allocation2] sm:$0xff]
    %v22 = vld [vmem:[#allocation2 + $0x8] sm:$0xff]
    %v23 = vmin.f32 %v21, 20.0
    %v24 = vmin.f32 %v22, 20.0
    %v25 = vmul.f32 %v23, 1.442695
    %v26 = vpow.pop %v25
    %v27 = vmul.f32 %v24, 1.442695
    %v28 = vpow.pop %v27
    %v29 = vadd.f32 %v26, 2.0
    %v30 = vadd.f32 %v28, 2.0
    %v31 = vmul.f32 %v26, %v29
    %v32 = vmul.f32 %v28, %v30
    %v33 = vadd.f32 %v31, 2.0
    %v34 = vadd.f32 %v32, 2.0
    %v35 = vrcp.pop %v33
    %v36 = vrcp.pop %v34
    %v37 = vmul.f32 %v33, %v35
    %v38 = vmul.f32 %v34, %v36
    %v39 = vsub.f32 2.0, %v37
    %v40 = vsub.f32 2.0, %v38
    %v41 = vmul.f32 %v35, %v39
    %v42 = vmul.f32 %v36, %v40
    %vm43 = vcmp.gt.f32.partialorder %v21, 20.0
    %vm44 = vcmp.gt.f32.partialorder %v22, 20.0
    %v45 = vmul.f32 %v31, %v41
    %v46 = vmul.f32 %v32, %v42
    %v47 = vmul.f32 %v21, %v45
    %v48 = vmul.f32 %v22, %v46
    %v49 = vsel %vm43, %v21, %v47
    %v50 = vsel %vm44, %v22, %v48
    %51 = vst [vmem:[#allocation5] sm:$0xff] %v49
    %52 = vst [vmem:[#allocation5 + $0x8] sm:$0xff] %v50
    // Predicated region
    $region10: #{tpu_custom_call.1} parent=1 // pred_check
      _
    $region11: #{tpu_custom_call.1} parent=1 // pred_check_branch
      %54 = sbr.rel (0) target = $region13
    $region12: #{tpu_custom_call.1} parent=1 // pred_region
      %s56 = ssub.s32 256, 256
      %57 = vsyncadd [#allocation4], %s56
      %s59 = sshll.u32 [#allocation5], 4
      %s60 = int_to_ptr.vmem [resolvable:$true] %s59
      %62 = dma.vmem_to_hbm [thread:$0]  %s60, 256, %s1, [#allocation4]
    $region13: #{tpu_custom_call.1} parent=1 // pred_fallthru
      _
    // Predicated region
    $region14: #{tpu_custom_call.1} parent=1 // pred_check
      _
    $region15: #{tpu_custom_call.1} parent=1 // pred_check_branch
      %64 = sbr.rel (0) target = $region17
    $region16: #{tpu_custom_call.1} parent=1 // pred_region
      %65 = dma.done [#allocation4], 256
    $region17: #{tpu_custom_call.1} parent=1 // pred_fallthru
      _
    %66 = vsyncpa [#allocation3], 1
    %67 = vsyncpa [#allocation4], 1

</llo_original>
